<compile_context>
chip_gen: v7x
topology: tpu7x:2x2x1
jax: 0.10.0
libtpu: 0.0.40
codegen_flags: <defaults>
</compile_context>

<pallas_src>
import functools

import jax
import jax.numpy as jnp
from jax import lax
from jax.experimental import pallas as pl
from jax.experimental.pallas import tpu as pltpu


def _round_up(n, m):
    return ((n + m - 1) // m) * m


def _cdiv(a, b):
    return -(-a // b)


def _choose_tm(M, feat, x_itemsize, act_itemsize):
    """Row tile: VMEM-budgeted (x stream + intermediates), capped, >= 8 grid steps when M large."""
    m_pad8 = _round_up(max(M, 1), 8)
    # Per-row VMEM bytes: double-buffered x tile + f32 matmul accumulators + activations + slack.
    x_row = 2 * feat * x_itemsize
    inter_row = (32 + 16) * 4 + (32 + 16) * act_itemsize + 32
    cap = (20 << 20) // (x_row + inter_row)          # ~20 MiB working set: fits v7x's 64 MiB VMEM
    cap = max(256, min(2048, (cap // 256) * 256))    # 512-2048 rows already ~85% of HBM roofline
    if m_pad8 <= min(cap, 1024):
        return m_pad8                                # tiny problem: a single tile
    n_tiles = max(8, _cdiv(m_pad8, cap))             # >=8 steps => DMA/compute overlap (>=4 per TC on v7x)
    tm = _round_up(_cdiv(m_pad8, n_tiles), 256)
    return min(cap, tm)


def _mlp_kernel(x_ref, w1_ref, b1_ref, w2_ref, b2_ref, w3t_ref, b3_ref, o_ref, *, act_dtype):
    f32 = jnp.float32
    # Layers 1-2: MXU matmuls with f32 accumulation; bias add in f32; tanh in act_dtype
    # (bf16 on v6e/v7x when x is bf16 -> bf16 EUP path + half the activation vregs; f32 otherwise).
    h1 = jnp.tanh((jnp.dot(x_ref[...], w1_ref[...], preferred_element_type=f32)
                   + b1_ref[...]).astype(act_dtype))
    h2 = jnp.tanh((jnp.dot(h1, w2_ref[...], preferred_element_type=f32)
                   + b2_ref[...]).astype(act_dtype))
    # Layer 3 (16 -> 1) as an NT contraction: (1,16) x (tm,16)^T -> lane-dense (1, tm) row.
    # Bias/tanh then touch tm/128 vregs (not tm/8) and the store is a full-lane vst, not vst.msk.
    o_row = lax.dot_general(w3t_ref[...], h2, (((1,), (1,)), ((), ())),
                            preferred_element_type=f32)
    o_row = jnp.tanh(o_row + b3_ref[...])
    o_ref[...] = o_row.reshape(o_ref.shape).astype(o_ref.dtype)


@functools.partial(jax.jit, static_argnames=("tm",))
def feature_model0_forward(x, params, *, tm=None):
    """x: (batch, timesteps, featSize) f32|bf16 -> (batch, 1, timesteps, 1) float32."""
    w1, b1, w2, b2, w3, b3 = params
    batch, timesteps, feat = x.shape
    M = batch * timesteps

    # bf16 fast path only when x is ALREADY bf16; wrapper never casts x (that would cost an
    # extra HBM read+write pass over x and lose more than the bf16 path gains).
    if x.dtype not in (jnp.float32, jnp.bfloat16):
        x = x.astype(jnp.float32)
    compute_dtype = x.dtype
    x_itemsize = jnp.dtype(compute_dtype).itemsize

    if tm is None:
        tm = _choose_tm(M, feat, x_itemsize, x_itemsize)
    tm = max(8, _round_up(int(tm), 8))
    num_tiles = _cdiv(M, tm)

    x2d = x.reshape(M, feat)                 # no wrapper pad: ragged tail block is masked by Pallas
    w1c = w1.astype(compute_dtype)
    w2c = w2.astype(compute_dtype)
    w3t = w3.T.astype(compute_dtype)         # (1, 16) row for the lane-dense NT contraction
    b1f = b1.astype(jnp.float32)
    b2f = b2.astype(jnp.float32)
    b3f = b3.astype(jnp.float32)

    # Per-generation VMEM budget: ~48 MiB on v7x (64 MiB phys), ~96 MiB on v5e/v6e (128 MiB phys).
    try:
        vmem_cap = int(pltpu.get_tpu_info().vmem_capacity_bytes)
    except Exception:
        vmem_cap = 64 << 20
    vmem_limit = int(min(100 << 20, max(48 << 20, (vmem_cap * 3) // 4)))

    # Third x buffer only on the 128-MiB-VMEM generations (v5e/v6e) with a deep enough grid.
    x_block, x_map = (tm, feat), (lambda i: (i, 0))
    x_spec = pl.BlockSpec(x_block, x_map)
    if vmem_cap >= (100 << 20) and num_tiles >= 3 and 3 * tm * feat * x_itemsize <= (16 << 20):
        try:
            x_spec = pl.BlockSpec(x_block, x_map, pipeline_mode=pl.Buffered(3))
        except Exception:
            x_spec = pl.BlockSpec(x_block, x_map)

    cost = pl.CostEstimate(
        flops=int(2 * M * (feat * 32 + 32 * 16 + 16)),
        transcendentals=int(49 * M),
        bytes_accessed=int(M * feat * x_itemsize + M * 4 + (feat * 32 + 32 * 16 + 16 + 49) * 4),
    )

    out3d = pl.pallas_call(
        functools.partial(_mlp_kernel, act_dtype=compute_dtype),
        out_shape=jax.ShapeDtypeStruct((num_tiles, 1, tm), jnp.float32),
        grid_spec=pltpu.PrefetchScalarGridSpec(
            num_scalar_prefetch=0,
            grid=(num_tiles,),
            in_specs=[
                x_spec,                                        # (tm, feat) row tile of x
                pl.BlockSpec((feat, 32), lambda i: (0, 0)),    # w1
                pl.BlockSpec((1, 32), lambda i: (0, 0)),       # b1
                pl.BlockSpec((32, 16), lambda i: (0, 0)),      # w2
                pl.BlockSpec((1, 16), lambda i: (0, 0)),       # b2
                pl.BlockSpec((1, 16), lambda i: (0, 0)),       # w3^T row
                pl.BlockSpec((1, 1), lambda i: (0, 0)),        # b3
            ],
            out_specs=pl.BlockSpec((1, 1, tm), lambda i: (i, 0, 0)),  # lane-dense output row
        ),
        compiler_params=pltpu.CompilerParams(
            dimension_semantics=("parallel",),
            vmem_limit_bytes=vmem_limit,
        ),
        cost_estimate=cost,
    )(x2d, w1c, b1f, w2c, b2f, w3t, b3f)

    out = out3d.reshape(num_tiles * tm)[:M]
    # == output.view(batch_size, 1, timesteps, 1)
    return out.reshape(batch, 1, timesteps, 1)


def init_params(key, feat_size):
    """Deterministic init mimicking torch.nn.Linear (uniform +-1/sqrt(fan_in))."""
    ks = jax.random.split(key, 6)

    def lin(kw, kb, fan_in, fan_out):
        bound = 1.0 / jnp.sqrt(jnp.float32(fan_in))
        w = jax.random.uniform(kw, (fan_in, fan_out), jnp.float32, -bound, bound)
        b = jax.random.uniform(kb, (1, fan_out), jnp.float32, -bound, bound)
        return w, b

    w1, b1 = lin(ks[0], ks[1], feat_size, 32)
    w2, b2 = lin(ks[2], ks[3], 32, 16)
    w3, b3 = lin(ks[4], ks[5], 16, 1)
    return (w1, b1, w2, b2, w3, b3)


def _reference(x, params):
    w1, b1, w2, b2, w3, b3 = params
    x = x.astype(jnp.float32)
    h = jnp.tanh(x @ w1 + b1[0])
    h = jnp.tanh(h @ w2 + b2[0])
    o = jnp.tanh(h @ w3 + b3[0])
    b, t, _ = x.shape
    return o.reshape(b, 1, t, 1)


if __name__ == "__main__":
    key = jax.random.PRNGKey(0)
    k_x, k_p = jax.random.split(key)

    batch, timesteps, feat_size = 2, 8, 32
    x = jax.random.normal(k_x, (batch, timesteps, feat_size), jnp.float32)
    params = init_params(k_p, feat_size)
    ref = _reference(x, params)

    # Tolerances are loose enough to absorb the TPU's default (bf16-pass) f32 matmul precision
    # while still catching any structural error (wrong weights/rows/bias would be O(0.1-1) off).

    # 1) default path: auto-chosen tile, f32, single grid step
    out = jax.block_until_ready(feature_model0_forward(x, params))
    assert out.shape == (batch, 1, timesteps, 1), out.shape
    assert jnp.allclose(out, ref, atol=2.5e-2, rtol=0), "f32 mismatch vs JAX reference"

    # 2) forced small tile: multi-step grid + ragged tail block (M=14, tm=8), no wrapper pad
    x_odd = x[:, :7, :]
    out_odd = jax.block_until_ready(feature_model0_forward(x_odd, params, tm=8))
    ref_odd = _reference(x_odd, params)
    assert out_odd.shape == (batch, 1, 7, 1), out_odd.shape
    assert jnp.allclose(out_odd, ref_odd, atol=2.5e-2, rtol=0), "ragged-grid mismatch"

    # 3) larger M: exercises the tm chooser, multi-tile grid and lane-dense (>=128-lane) stores
    xb = jax.random.normal(jax.random.PRNGKey(1), (4, 300, feat_size), jnp.float32)
    out_b = jax.block_until_ready(feature_model0_forward(xb, params))
    ref_b = _reference(xb, params)
    assert out_b.shape == (4, 1, 300, 1), out_b.shape
    assert jnp.allclose(out_b, ref_b, atol=2.5e-2, rtol=0), "multi-tile mismatch"

    # 4) bf16 fast path: only taken because x is ALREADY bf16 (wrapper never casts x)
    x_bf16 = x.astype(jnp.bfloat16)
    out_bf16 = jax.block_until_ready(feature_model0_forward(x_bf16, params))
    assert out_bf16.shape == (batch, 1, timesteps, 1), out_bf16.shape
    assert jnp.allclose(out_bf16, ref, atol=6e-2, rtol=0), "bf16 mismatch vs reference"

    print("KERNEL_OK")
</pallas_src>

<mosaic_0001>
module attributes {stable_mosaic.version = 11 : i64} {
  func.func @_mlp_kernel(%arg0: i32, %arg1: memref<16x32xf32, #tpu.memory_space<vmem>>, %arg2: memref<32x32xf32, #tpu.memory_space<vmem>>, %arg3: memref<1x32xf32, #tpu.memory_space<vmem>>, %arg4: memref<32x16xf32, #tpu.memory_space<vmem>>, %arg5: memref<1x16xf32, #tpu.memory_space<vmem>>, %arg6: memref<1x16xf32, #tpu.memory_space<vmem>>, %arg7: memref<1x1xf32, #tpu.memory_space<vmem>>, %arg8: memref<1x1x16xf32, #tpu.memory_space<vmem>>) attributes {dimension_semantics = [#tpu.dimension_semantics<parallel>], iteration_bounds = array<i64: 1>, scalar_prefetch = 0 : i64, scratch_operands = 0 : i64, tpu.core_type = #tpu.core_type<tc>, window_params = [{transform_indices = @transform_0, window_bounds = array<i64: 16, 32>}, {pipeline_mode = #tpu.pipeline_mode<synchronous>, transform_indices = @transform_1, window_bounds = array<i64: 32, 32>}, {pipeline_mode = #tpu.pipeline_mode<synchronous>, transform_indices = @transform_2, window_bounds = array<i64: 1, 32>}, {pipeline_mode = #tpu.pipeline_mode<synchronous>, transform_indices = @transform_3, window_bounds = array<i64: 32, 16>}, {pipeline_mode = #tpu.pipeline_mode<synchronous>, transform_indices = @transform_4, window_bounds = array<i64: 1, 16>}, {pipeline_mode = #tpu.pipeline_mode<synchronous>, transform_indices = @transform_5, window_bounds = array<i64: 1, 16>}, {pipeline_mode = #tpu.pipeline_mode<synchronous>, transform_indices = @transform_6, window_bounds = array<i64: 1, 1>}, {transform_indices = @transform_7, window_bounds = array<i64: 1, 1, 16>}]} {
    %c0 = arith.constant 0 : index
    %c0_0 = arith.constant 0 : index
    %0 = vector.load %arg1[%c0, %c0_0] : memref<16x32xf32, #tpu.memory_space<vmem>>, vector<16x32xf32>
    %c0_1 = arith.constant 0 : index
    %c0_2 = arith.constant 0 : index
    %1 = vector.load %arg2[%c0_1, %c0_2] : memref<32x32xf32, #tpu.memory_space<vmem>>, vector<32x32xf32>
    %cst = arith.constant dense<0.000000e+00> : vector<16x32xf32>
    %2 = tpu.matmul %0, %1, %cst {dimension_numbers = #tpu.dot_dimension_numbers<[1], [0], [0], [1], [0, 0, 1, 1], [], []>} : vector<16x32xf32>, vector<32x32xf32>, vector<16x32xf32> -> vector<16x32xf32>
    %c0_3 = arith.constant 0 : index
    %c0_4 = arith.constant 0 : index
    %3 = vector.load %arg3[%c0_3, %c0_4] : memref<1x32xf32, #tpu.memory_space<vmem>>, vector<1x32xf32>
    %4 = vector.broadcast %3 : vector<1x32xf32> to vector<16x32xf32>
    %5 = arith.addf %2, %4 : vector<16x32xf32>
    %6 = math.tanh %5 : vector<16x32xf32>
    %c0_5 = arith.constant 0 : index
    %c0_6 = arith.constant 0 : index
    %7 = vector.load %arg4[%c0_5, %c0_6] : memref<32x16xf32, #tpu.memory_space<vmem>>, vector<32x16xf32>
    %cst_7 = arith.constant dense<0.000000e+00> : vector<16x16xf32>
    %8 = tpu.matmul %6, %7, %cst_7 {dimension_numbers = #tpu.dot_dimension_numbers<[1], [0], [0], [1], [0, 0, 1, 1], [], []>} : vector<16x32xf32>, vector<32x16xf32>, vector<16x16xf32> -> vector<16x16xf32>
    %c0_8 = arith.constant 0 : index
    %c0_9 = arith.constant 0 : index
    %9 = vector.load %arg5[%c0_8, %c0_9] : memref<1x16xf32, #tpu.memory_space<vmem>>, vector<1x16xf32>
    %10 = vector.broadcast %9 : vector<1x16xf32> to vector<16x16xf32>
    %11 = arith.addf %8, %10 : vector<16x16xf32>
    %12 = math.tanh %11 : vector<16x16xf32>
    %c0_10 = arith.constant 0 : index
    %c0_11 = arith.constant 0 : index
    %13 = vector.load %arg6[%c0_10, %c0_11] : memref<1x16xf32, #tpu.memory_space<vmem>>, vector<1x16xf32>
    %cst_12 = arith.constant dense<0.000000e+00> : vector<1x16xf32>
    %14 = tpu.matmul %13, %12, %cst_12 {dimension_numbers = #tpu.dot_dimension_numbers<[1], [1], [0], [0], [0, 0, 1, 0], [], []>} : vector<1x16xf32>, vector<16x16xf32>, vector<1x16xf32> -> vector<1x16xf32>
    %c0_13 = arith.constant 0 : index
    %c0_14 = arith.constant 0 : index
    %15 = vector.load %arg7[%c0_13, %c0_14] : memref<1x1xf32, #tpu.memory_space<vmem>>, vector<1x1xf32>
    %16 = vector.broadcast %15 : vector<1x1xf32> to vector<1x16xf32>
    %17 = arith.addf %14, %16 : vector<1x16xf32>
    %18 = math.tanh %17 : vector<1x16xf32>
    %19 = vector.shape_cast %18 : vector<1x16xf32> to vector<1x1x16xf32>
    %c0_15 = arith.constant 0 : index
    %c0_16 = arith.constant 0 : index
    %c0_17 = arith.constant 0 : index
    %20 = vector.load %arg8[%c0_15, %c0_16, %c0_17] : memref<1x1x16xf32, #tpu.memory_space<vmem>>, vector<1x1x16xf32>
    tpu.vector_store %arg8[%c0_15, %c0_16, %c0_17], %19 {strides = array<i32>} : memref<1x1x16xf32, #tpu.memory_space<vmem>>, vector<1x1x16xf32>,
    return
  }
  func.func @transform_0(%arg0: i32) -> (i32, i32) {
    %c0_i32 = arith.constant 0 : i32
    %c0_i32_0 = arith.constant 0 : i32
    return %arg0, %c0_i32 : i32, i32
  }
  func.func @transform_1(%arg0: i32) -> (i32, i32) {
    %c0_i32 = arith.constant 0 : i32
    %c0_i32_0 = arith.constant 0 : i32
    %c0_i32_1 = arith.constant 0 : i32
    return %c0_i32, %c0_i32_0 : i32, i32
  }
  func.func @transform_2(%arg0: i32) -> (i32, i32) {
    %c0_i32 = arith.constant 0 : i32
    %c0_i32_0 = arith.constant 0 : i32
    %c0_i32_1 = arith.constant 0 : i32
    return %c0_i32, %c0_i32_0 : i32, i32
  }
  func.func @transform_3(%arg0: i32) -> (i32, i32) {
    %c0_i32 = arith.constant 0 : i32
    %c0_i32_0 = arith.constant 0 : i32
    %c0_i32_1 = arith.constant 0 : i32
    return %c0_i32, %c0_i32_0 : i32, i32
  }
  func.func @transform_4(%arg0: i32) -> (i32, i32) {
    %c0_i32 = arith.constant 0 : i32
    %c0_i32_0 = arith.constant 0 : i32
    %c0_i32_1 = arith.constant 0 : i32
    return %c0_i32, %c0_i32_0 : i32, i32
  }
  func.func @transform_5(%arg0: i32) -> (i32, i32) {
    %c0_i32 = arith.constant 0 : i32
    %c0_i32_0 = arith.constant 0 : i32
    %c0_i32_1 = arith.constant 0 : i32
    return %c0_i32, %c0_i32_0 : i32, i32
  }
  func.func @transform_6(%arg0: i32) -> (i32, i32) {
    %c0_i32 = arith.constant 0 : i32
    %c0_i32_0 = arith.constant 0 : i32
    %c0_i32_1 = arith.constant 0 : i32
    return %c0_i32, %c0_i32_0 : i32, i32
  }
  func.func @transform_7(%arg0: i32) -> (i32, i32, i32) {
    %c0_i32 = arith.constant 0 : i32
    %c0_i32_0 = arith.constant 0 : i32
    %c0_i32_1 = arith.constant 0 : i32
    return %arg0, %c0_i32, %c0_i32_0 : i32, i32, i32
  }
}

</mosaic_0001>

<llo_original>
// kernel: feature_model0_forward.1
$region0: #{feature_model0_forward.1}
  #allocation0 [shape = 'u32[]', space=smem, size = 0x4, offset = 0x4, fixed_abs, tag = 'smem constant byte address 0x4 - core index']
  #allocation1 [shape = 'u32[144,128]{1,0:T(1,128)}', space=vmem, size = 0x12000, scoped, tag = 'internal scratch']
  #allocation2 [shape = 'f32[1,1]{1,0:T(1,128)S(1)}', space=vmem, size = 0x200, scoped, tag = 'scoped memory for feature_model0_forward.1']
  %s0 = inlined_call_operand.vmem [shape: f32[16,32], index: 0, kind: input, shape index: {}]
  %s1 = inlined_call_operand.vmem [shape: f32[32,32], index: 1, kind: input, shape index: {}]
  %s2 = inlined_call_operand.vmem [shape: f32[1,32], index: 2, kind: input, shape index: {}]
  %s3 = inlined_call_operand.vmem [shape: f32[32,16], index: 3, kind: input, shape index: {}]
  %s4 = inlined_call_operand.vmem [shape: f32[1,16], index: 4, kind: input, shape index: {}]
  %s5 = inlined_call_operand.vmem [shape: f32[1,16], index: 5, kind: input, shape index: {}]
  %s6 = inlined_call_operand.<no memory space> [shape: f32[1,1], index: 6, kind: input, shape index: {}]
  %s7 = inlined_call_operand.vmem [shape: f32[1,1,16], index: 7, kind: output, shape index: {}]
  %s8 = sld [smem:[#allocation0]]
  $region38: #{feature_model0_forward.1} parent=0
    _
  %s10 = ssub.s32 1, %s8
  %s11 = scalar_select 0, %s10, %s8
  %v12 = vstv %s6
  %13 = vst [vmem:[#allocation2] sm:$0x1] %v12
  // Predicated region
  $region2: #{feature_model0_forward.1} parent=0 // pred_check
    _
  $region3: #{feature_model0_forward.1} parent=0 // pred_check_branch
    %15 = sbr.rel (0) target = $region5
  $region4: #{feature_model0_forward.1} parent=0 // pred_region
    _
  $region5: #{feature_model0_forward.1} parent=0 // pred_fallthru
    _
  // Predicated region
  $region6: #{feature_model0_forward.1} parent=0 // pred_check
    _
  $region7: #{feature_model0_forward.1} parent=0 // pred_check_branch
    %17 = sbr.rel (0) target = $region9
  $region8: #{feature_model0_forward.1} parent=0 // pred_region
    _
  $region9: #{feature_model0_forward.1} parent=0 // pred_fallthru
    _
  // Predicated region
  $region10: #{feature_model0_forward.1} parent=0 // pred_check
    _
  $region11: #{feature_model0_forward.1} parent=0 // pred_check_branch
    %19 = sbr.rel (0) target = $region13
  $region12: #{feature_model0_forward.1} parent=0 // pred_region
    _
  $region13: #{feature_model0_forward.1} parent=0 // pred_fallthru
    _
  // Predicated region
  $region14: #{feature_model0_forward.1} parent=0 // pred_check
    _
  $region15: #{feature_model0_forward.1} parent=0 // pred_check_branch
    %21 = sbr.rel (0) target = $region17
  $region16: #{feature_model0_forward.1} parent=0 // pred_region
    _
  $region17: #{feature_model0_forward.1} parent=0 // pred_fallthru
    _
  // Predicated region
  $region18: #{feature_model0_forward.1} parent=0 // pred_check
    _
  $region19: #{feature_model0_forward.1} parent=0 // pred_check_branch
    %23 = sbr.rel (0) target = $region21
  $region20: #{feature_model0_forward.1} parent=0 // pred_region
    _
  $region21: #{feature_model0_forward.1} parent=0 // pred_fallthru
    _
  // Predicated region
  $region22: #{feature_model0_forward.1} parent=0 // pred_check
    _
  $region23: #{feature_model0_forward.1} parent=0 // pred_check_branch
    %25 = sbr.rel (0) target = $region25
  $region24: #{feature_model0_forward.1} parent=0 // pred_region
    _
  $region25: #{feature_model0_forward.1} parent=0 // pred_fallthru
    _
  // Predicated region
  $region26: #{feature_model0_forward.1} parent=0 // pred_check
    _
  $region27: #{feature_model0_forward.1} parent=0 // pred_check_branch
    %27 = sbr.rel (0) target = $region29
  $region28: #{feature_model0_forward.1} parent=0 // pred_region
    _
  $region29: #{feature_model0_forward.1} parent=0 // pred_fallthru
    _
  %v28 = vld [vmem:[%s0] sm:$0xff]
  %v29 = vld [vmem:[%s0 + $0x8] sm:$0xff]
  %v30 = vld [vmem:[%s1] sm:$0xff]
  %v31 = vld [vmem:[%s1 + $0x8] sm:$0xff]
  %v32 = vld [vmem:[%s1 + $0x10] sm:$0xff]
  %v33 = vld [vmem:[%s1 + $0x18] sm:$0xff]
  %v34 = vld [vmem:[%s2] sm:$0x1]
  %v36 = vlaneseq
  %v37 = vshrl.u32 %v36, 7
  %v38 = vsub.s32 0, %v37
  %v39 = vrot.slane %v34, %v38
  %vm41 = vcmask 261120
  %v43 = vsel %vm41, %v28, 0
  %v46 = vsel %vm41, %v29, 0
  %48 = vmatprep.subr.mxu0 0.0
  %49 = vmatpush1.msra.mxu0 %v30
  %50 = vmatprep.subr.mxu0 0.0
  %51 = vmatpush1.msra.mxu0 %v31
  %52 = vmatprep.subr.mxu0 0.0
  %53 = vmatpush1.msra.mxu0 %v32
  %54 = vmatprep.subr.mxu0 0.0
  %55 = vmatpush1.msra.mxu0 %v33
  %56 = vmatprep.subr.mxu0 0.0
  %57 = vmatpush1.msra.mxu0 0.0
  %58 = vmatprep.subr.mxu0 0.0
  %59 = vmatpush1.msra.mxu0 0.0
  %60 = vmatprep.subr.mxu0 0.0
  %61 = vmatpush1.msra.mxu0 0.0
  %62 = vmatprep.subr.mxu0 0.0
  %63 = vmatpush1.msra.mxu0 0.0
  %64 = vmatprep.subr.mxu0 0.0
  %65 = vmatpush1.msra.mxu0 0.0
  %66 = vmatprep.subr.mxu0 0.0
  %67 = vmatpush1.msra.mxu0 0.0
  %68 = vmatprep.subr.mxu0 0.0
  %69 = vmatpush1.msra.mxu0 0.0
  %70 = vmatprep.subr.mxu0 0.0
  %71 = vmatpush1.msra.mxu0 0.0
  %72 = vmatprep.subr.mxu0 0.0
  %73 = vmatpush1.msra.mxu0 0.0
  %74 = vmatprep.subr.mxu0 0.0
  %75 = vmatpush1.msra.mxu0 0.0
  %76 = vmatprep.subr.mxu0 0.0
  %77 = vmatpush1.msra.mxu0 0.0
  %78 = vmatprep.subr.mxu0 0.0
  %79 = vmatpush1.msra.mxu0 0.0
  %80 = vmatprep.subr.mxu0 0.0
  %81 = vmatpush1.msra.mxu0 0.0
  %82 = vmatprep.subr.mxu0 0.0
  %83 = vmatpush1.msra.mxu0 0.0
  %84 = vmatprep.subr.mxu0 0.0
  %85 = vmatpush1.msra.mxu0 0.0
  %86 = vmatprep.subr.mxu0 0.0
  %87 = vmatpush1.msra.mxu0 0.0
  %88 = vmatprep.subr.mxu0 0.0
  %89 = vmatpush1.msra.mxu0 0.0
  %90 = vmatprep.subr.mxu0 0.0
  %91 = vmatpush1.msra.mxu0 0.0
  %92 = vmatprep.subr.mxu0 0.0
  %93 = vmatpush1.msra.mxu0 0.0
  %94 = vmatprep.subr.mxu0 0.0
  %95 = vmatpush1.msra.mxu0 0.0
  %96 = vmatprep.subr.mxu0 0.0
  %97 = vmatpush1.msra.mxu0 0.0
  %98 = vmatprep.subr.mxu0 0.0
  %99 = vmatpush1.msra.mxu0 0.0
  %100 = vmatprep.subr.mxu0 0.0
  %101 = vmatpush1.msra.mxu0 0.0
  %102 = vmatprep.subr.mxu0 0.0
  %103 = vmatpush1.msra.mxu0 0.0
  %104 = vmatprep.subr.mxu0 0.0
  %105 = vmatpush1.msra.mxu0 0.0
  %106 = vmatprep.subr.mxu0 0.0
  %107 = vmatpush1.msra.mxu0 0.0
  %108 = vmatprep.subr.mxu0 0.0
  %109 = vmatpush1.msra.mxu0 0.0
  %110 = vmatprep.subr.mxu0 0.0
  %111 = vmatpush1.msra.mxu0 0.0
  %112 = vmatprep.mubr.f32.mxu0 0.0
  %113 = vmatmul.mubr.f32.gmra.mrb[0].mxu0 %v43
  %v114 = vpop.f32.mrb[0].mxu0
  %v115 = vadd.f32 %v39, %v114
  %v116 = vpop.f32.mrb[0].mxu0
  %117 = vmatprep.mubr.f32.mxu0 0.0
  %118 = vmatmul.mubr.f32.gmra.mrb[0].mxu0 %v46
  %v119 = vpop.f32.mrb[0].mxu0
  %v120 = vadd.f32 %v39, %v119
  %v121 = vpop.f32.mrb[0].mxu0
  %122 = vdwg.mxu0
  %v123 = vtanh.pop %v115
  %v124 = vtanh.pop %v120
  %v125 = vld [vmem:[%s3] sm:$0xff]
  %v126 = vld [vmem:[%s3 + $0x8] sm:$0xff]
  %v127 = vld [vmem:[%s3 + $0x10] sm:$0xff]
  %v128 = vld [vmem:[%s3 + $0x18] sm:$0xff]
  %v129 = vld [vmem:[%s4] sm:$0x1]
  %v131 = vlaneseq
  %v132 = vshrl.u32 %v131, 7
  %v133 = vsub.s32 0, %v132
  %v134 = vrot.slane %v129, %v133
  %v137 = vsel %vm41, %v123, 0
  %v140 = vsel %vm41, %v124, 0
  %142 = vmatprep.subr.mxu0 0.0
  %143 = vmatpush1.msra.mxu0 %v125
  %144 = vmatprep.subr.mxu0 0.0
  %145 = vmatpush1.msra.mxu0 %v126
  %146 = vmatprep.subr.mxu0 0.0
  %147 = vmatpush1.msra.mxu0 %v127
  %148 = vmatprep.subr.mxu0 0.0
  %149 = vmatpush1.msra.mxu0 %v128
  %150 = vmatprep.subr.mxu0 0.0
  %151 = vmatpush1.msra.mxu0 0.0
  %152 = vmatprep.subr.mxu0 0.0
  %153 = vmatpush1.msra.mxu0 0.0
  %154 = vmatprep.subr.mxu0 0.0
  %155 = vmatpush1.msra.mxu0 0.0
  %156 = vmatprep.subr.mxu0 0.0
  %157 = vmatpush1.msra.mxu0 0.0
  %158 = vmatprep.subr.mxu0 0.0
  %159 = vmatpush1.msra.mxu0 0.0
  %160 = vmatprep.subr.mxu0 0.0
  %161 = vmatpush1.msra.mxu0 0.0
  %162 = vmatprep.subr.mxu0 0.0
  %163 = vmatpush1.msra.mxu0 0.0
  %164 = vmatprep.subr.mxu0 0.0
  %165 = vmatpush1.msra.mxu0 0.0
  %166 = vmatprep.subr.mxu0 0.0
  %167 = vmatpush1.msra.mxu0 0.0
  %168 = vmatprep.subr.mxu0 0.0
  %169 = vmatpush1.msra.mxu0 0.0
  %170 = vmatprep.subr.mxu0 0.0
  %171 = vmatpush1.msra.mxu0 0.0
  %172 = vmatprep.subr.mxu0 0.0
  %173 = vmatpush1.msra.mxu0 0.0
  %174 = vmatprep.subr.mxu0 0.0
  %175 = vmatpush1.msra.mxu0 0.0
  %176 = vmatprep.subr.mxu0 0.0
  %177 = vmatpush1.msra.mxu0 0.0
  %178 = vmatprep.subr.mxu0 0.0
  %179 = vmatpush1.msra.mxu0 0.0
  %180 = vmatprep.subr.mxu0 0.0
  %181 = vmatpush1.msra.mxu0 0.0
  %182 = vmatprep.subr.mxu0 0.0
  %183 = vmatpush1.msra.mxu0 0.0
  %184 = vmatprep.subr.mxu0 0.0
  %185 = vmatpush1.msra.mxu0 0.0
  %186 = vmatprep.subr.mxu0 0.0
  %187 = vmatpush1.msra.mxu0 0.0
  %188 = vmatprep.subr.mxu0 0.0
  %189 = vmatpush1.msra.mxu0 0.0
  %190 = vmatprep.subr.mxu0 0.0
  %191 = vmatpush1.msra.mxu0 0.0
  %192 = vmatprep.subr.mxu0 0.0
  %193 = vmatpush1.msra.mxu0 0.0
  %194 = vmatprep.subr.mxu0 0.0
  %195 = vmatpush1.msra.mxu0 0.0
  %196 = vmatprep.subr.mxu0 0.0
  %197 = vmatpush1.msra.mxu0 0.0
  %198 = vmatprep.subr.mxu0 0.0
  %199 = vmatpush1.msra.mxu0 0.0
  %200 = vmatprep.subr.mxu0 0.0
  %201 = vmatpush1.msra.mxu0 0.0
  %202 = vmatprep.subr.mxu0 0.0
  %203 = vmatpush1.msra.mxu0 0.0
  %204 = vmatprep.subr.mxu0 0.0
  %205 = vmatpush1.msra.mxu0 0.0
  %206 = vmatprep.mubr.f32.mxu0 0.0
  %207 = vmatmul.mubr.f32.gmra.mrb[0].mxu0 %v137
  %v208 = vpop.f32.mrb[0].mxu0
  %v209 = vadd.f32 %v134, %v208
  %v210 = vpop.f32.mrb[0].mxu0
  %211 = vmatprep.mubr.f32.mxu0 0.0
  %212 = vmatmul.mubr.f32.gmra.mrb[0].mxu0 %v140
  %v213 = vpop.f32.mrb[0].mxu0
  %v214 = vadd.f32 %v134, %v213
  %v215 = vpop.f32.mrb[0].mxu0
  %216 = vdwg.mxu0
  %v217 = vtanh.pop %v209
  %v218 = vtanh.pop %v214
  %v219 = vld [vmem:[%s5] sm:$0x1]
  %v220 = vld [vmem:[#allocation2] sm:$0x1]
  %222 = vset.pattern.permute.xlu0 0
  %223 = vperm.xlu0 %222, %v220
  %v224 = vpop.permute.xlu0 %223
  %v226 = vlaneseq
  %v227 = vshrl.u32 %v226, 7
  %v228 = vsub.s32 0, %v227
  %v229 = vrot.slane %v224, %v228
  %vm230 = vcmask 130048
  %v232 = vsel %vm230, %v219, 0
  %v235 = vsel %vm230, %v217, 0
  %v238 = vsel %vm230, %v218, 0
  %240 = vmatprep.subr.mxu0 0.0
  %241 = vmatpush1.xpose.msra.mxu0 %v235
  %242 = vmatprep.subr.mxu0 0.0
  %243 = vmatpush1.xpose.msra.mxu0 %v238
  %244 = vmatprep.subr.mxu0 0.0
  %245 = vmatpush1.xpose.msra.mxu0 0.0
  %246 = vmatprep.subr.mxu0 0.0
  %247 = vmatpush1.xpose.msra.mxu0 0.0
  %248 = vmatprep.subr.mxu0 0.0
  %249 = vmatpush1.xpose.msra.mxu0 0.0
  %250 = vmatprep.subr.mxu0 0.0
  %251 = vmatpush1.xpose.msra.mxu0 0.0
  %252 = vmatprep.subr.mxu0 0.0
  %253 = vmatpush1.xpose.msra.mxu0 0.0
  %254 = vmatprep.subr.mxu0 0.0
  %255 = vmatpush1.xpose.msra.mxu0 0.0
  %256 = vmatprep.subr.mxu0 0.0
  %257 = vmatpush1.xpose.msra.mxu0 0.0
  %258 = vmatprep.subr.mxu0 0.0
  %259 = vmatpush1.xpose.msra.mxu0 0.0
  %260 = vmatprep.subr.mxu0 0.0
  %261 = vmatpush1.xpose.msra.mxu0 0.0
  %262 = vmatprep.subr.mxu0 0.0
  %263 = vmatpush1.xpose.msra.mxu0 0.0
  %264 = vmatprep.subr.mxu0 0.0
  %265 = vmatpush1.xpose.msra.mxu0 0.0
  %266 = vmatprep.subr.mxu0 0.0
  %267 = vmatpush1.xpose.msra.mxu0 0.0
  %268 = vmatprep.subr.mxu0 0.0
  %269 = vmatpush1.xpose.msra.mxu0 0.0
  %270 = vmatprep.subr.mxu0 0.0
  %271 = vmatpush1.xpose.msra.mxu0 0.0
  %272 = vmatprep.subr.mxu0 0.0
  %273 = vmatpush1.xpose.msra.mxu0 0.0
  %274 = vmatprep.subr.mxu0 0.0
  %275 = vmatpush1.xpose.msra.mxu0 0.0
  %276 = vmatprep.subr.mxu0 0.0
  %277 = vmatpush1.xpose.msra.mxu0 0.0
  %278 = vmatprep.subr.mxu0 0.0
  %279 = vmatpush1.xpose.msra.mxu0 0.0
  %280 = vmatprep.subr.mxu0 0.0
  %281 = vmatpush1.xpose.msra.mxu0 0.0
  %282 = vmatprep.subr.mxu0 0.0
  %283 = vmatpush1.xpose.msra.mxu0 0.0
  %284 = vmatprep.subr.mxu0 0.0
  %285 = vmatpush1.xpose.msra.mxu0 0.0
  %286 = vmatprep.subr.mxu0 0.0
  %287 = vmatpush1.xpose.msra.mxu0 0.0
  %288 = vmatprep.subr.mxu0 0.0
  %289 = vmatpush1.xpose.msra.mxu0 0.0
  %290 = vmatprep.subr.mxu0 0.0
  %291 = vmatpush1.xpose.msra.mxu0 0.0
  %292 = vmatprep.subr.mxu0 0.0
  %293 = vmatpush1.xpose.msra.mxu0 0.0
  %294 = vmatprep.subr.mxu0 0.0
  %295 = vmatpush1.xpose.msra.mxu0 0.0
  %296 = vmatprep.subr.mxu0 0.0
  %297 = vmatpush1.xpose.msra.mxu0 0.0
  %298 = vmatprep.subr.mxu0 0.0
  %299 = vmatpush1.xpose.msra.mxu0 0.0
  %300 = vmatprep.subr.mxu0 0.0
  %301 = vmatpush1.xpose.msra.mxu0 0.0
  %302 = vmatprep.subr.mxu0 0.0
  %303 = vmatpush1.xpose.msra.mxu0 0.0
  %304 = vmatprep.mubr.f32.mxu0 0.0
  %305 = vmatmul.mubr.f32.gmra.mrb[0].mxu0 %v232
  %v306 = vpop.f32.mrb[0].mxu0
  %v307 = vadd.f32 %v229, %v306
  %v308 = vpop.f32.mrb[0].mxu0
  %309 = vdwg.mxu0
  %v310 = vtanh.pop %v307
  %vm311 = vcmask 122880
  %312 = vst.msk [vmem:[%s7] sm:$0x1] %vm311, %v310
  // Predicated region
  $region30: #{feature_model0_forward.1} parent=0 // pred_check
    _
  $region31: #{feature_model0_forward.1} parent=0 // pred_check_branch
    %314 = sbr.rel (0) target = $region33
  $region32: #{feature_model0_forward.1} parent=0 // pred_region
    _
  $region33: #{feature_model0_forward.1} parent=0 // pred_fallthru
    _
  // Predicated region
  $region34: #{feature_model0_forward.1} parent=0 // pred_check
    _
  $region35: #{feature_model0_forward.1} parent=0 // pred_check_branch
    %316 = sbr.rel (0) target = $region37
  $region36: #{feature_model0_forward.1} parent=0 // pred_region
    _
  $region37: #{feature_model0_forward.1} parent=0 // pred_fallthru
    _

</llo_original>
